<compile_context>
chip_gen: v7x
topology: tpu7x:2x2x1
jax: 0.10.0
libtpu: 0.0.40
codegen_flags: <defaults>
</compile_context>

<pallas_src>
import jax
import jax.numpy as jnp
import numpy as np
from jax.experimental import pallas as pl
from jax.experimental.pallas import tpu as pltpu

LN_EPS = 1e-5  # PyTorch nn.LayerNorm default


def _round_up(x, m):
    return (x + m - 1) // m * m


def _oracle_head_kernel(idx_ref, bo_ref, w1_ref, b1_ref, g_ref, be_ref,
                        w2_ref, b2_ref, out_ref):
    """One row-block of the action-classifier head.

    idx_ref : (3*RB, 1) i32   flattened (batch-offset) token positions, stacked
                              [stack1 rows | stack2 rows | buffer rows]
    bo_ref  : (B*L, H)  f32   flattened BERT encodings (whole batch)
    w1_ref  : (3H, M)   f32
    b1_ref  : (1, M)    f32
    g_ref   : (1, M)    f32   LayerNorm gamma
    be_ref  : (1, M)    f32   LayerNorm beta
    w2_ref  : (M, A_pad) f32  action weights, lane-padded to 128
    b2_ref  : (1, A_pad) f32
    out_ref : (RB, A_pad) f32
    """
    idx = idx_ref[...]                                   # (3*RB, 1)
    rb3 = idx.shape[0]
    rb = rb3 // 3
    bl = bo_ref.shape[0]

    # Gather all three features for all RB rows with ONE one-hot matmul on the MXU.
    pos = jax.lax.broadcasted_iota(jnp.int32, (rb3, bl), 1)
    onehot = (pos == idx).astype(jnp.float32)            # (3*RB, B*L)
    gath = jnp.dot(onehot, bo_ref[...],
                   preferred_element_type=jnp.float32)   # (3*RB, H)

    # concat(stack1, stack2, buffer) along hidden -> (RB, 3H), then ONE wide-K Linear.
    feats = jnp.concatenate(
        [gath[0:rb], gath[rb:2 * rb], gath[2 * rb:3 * rb]], axis=-1)  # (RB, 3H)
    h = jnp.dot(feats, w1_ref[...],
                preferred_element_type=jnp.float32) + b1_ref[...]     # (RB, M)

    # LayerNorm over the hidden (lane) dimension, f32 stats.
    mean = jnp.mean(h, axis=-1, keepdims=True)
    cen = h - mean
    var = jnp.mean(cen * cen, axis=-1, keepdims=True)
    hn = cen * jax.lax.rsqrt(var + LN_EPS) * g_ref[...] + be_ref[...]

    # ReLU + second Linear into a lane-dense (RB, 128) slab.
    hr = jnp.maximum(hn, 0.0)
    out_ref[...] = jnp.dot(hr, w2_ref[...],
                           preferred_element_type=jnp.float32) + b2_ref[...]


def classifier_head_pallas(bert_output, state_idx, w1, b1, gamma, beta, w2, b2,
                           *, row_block=512):
    """Action-classifier head for all batch elements, rows blocked across the grid."""
    B, L, H = bert_output.shape
    S = state_idx.shape[1]
    M = w1.shape[1]
    A = w2.shape[1]

    R = B * S
    RB = min(_round_up(R, 8), _round_up(row_block, 8))
    R_pad = _round_up(R, RB)
    G = R_pad // RB
    A_pad = _round_up(A, 128)
    BL = B * L

    # Flatten encodings and indices to global token positions.
    bo_flat = bert_output.reshape(BL, H).astype(jnp.float32)
    flat_idx = (state_idx.astype(jnp.int32)
                + (jnp.arange(B, dtype=jnp.int32) * L)[:, None, None]).reshape(R, 3)
    flat_idx = jnp.pad(flat_idx, ((0, R_pad - R), (0, 0)))
    # Per row-block, stack the three feature columns: (G, RB, 3) -> (G, 3, RB) -> (G*3*RB, 1)
    idx_stacked = flat_idx.reshape(G, RB, 3).transpose(0, 2, 1).reshape(G * 3 * RB, 1)

    # Pad the action dim to a lane-dense multiple of 128 (unmasked stores / full MXU cols).
    w2_pad = jnp.pad(w2, ((0, 0), (0, A_pad - A)))
    b2_pad = jnp.pad(b2, ((0, 0), (0, A_pad - A)))

    flops = int(G * (2 * (3 * RB) * BL * H + 2 * RB * (3 * H) * M + 2 * RB * M * A_pad))
    bytes_accessed = int(
        idx_stacked.size * 4
        + G * 4 * (bo_flat.size + w1.size + b1.size + gamma.size
                   + beta.size + w2_pad.size + b2_pad.size)
        + 4 * R_pad * A_pad)
    cost = pl.CostEstimate(flops=flops, transcendentals=int(R_pad),
                           bytes_accessed=bytes_accessed)

    out = pl.pallas_call(
        _oracle_head_kernel,
        out_shape=jax.ShapeDtypeStruct((R_pad, A_pad), jnp.float32),
        grid=(G,),
        in_specs=[
            pl.BlockSpec((3 * RB, 1), lambda i: (i, 0)),
            pl.BlockSpec((BL, H), lambda i: (0, 0)),
            pl.BlockSpec((3 * H, M), lambda i: (0, 0)),
            pl.BlockSpec((1, M), lambda i: (0, 0)),
            pl.BlockSpec((1, M), lambda i: (0, 0)),
            pl.BlockSpec((1, M), lambda i: (0, 0)),
            pl.BlockSpec((M, A_pad), lambda i: (0, 0)),
            pl.BlockSpec((1, A_pad), lambda i: (0, 0)),
        ],
        out_specs=pl.BlockSpec((RB, A_pad), lambda i: (i, 0)),
        compiler_params=pltpu.CompilerParams(
            dimension_semantics=("parallel",),
            vmem_limit_bytes=32 * 1024 * 1024),
        cost_estimate=cost,
    )(idx_stacked, bo_flat, w1, b1, gamma, beta, w2_pad, b2_pad)

    return out[:R, :A].reshape(B, S, A)


def init_params(key, vocab_size, hidden_size, mlp_hidden_size, num_actions, num_features=3):
    k_emb, k_w1, k_w2 = jax.random.split(key, 3)
    return {
        "emb": jax.random.normal(k_emb, (vocab_size, hidden_size), jnp.float32) * 0.02,
        "w1": jax.random.normal(k_w1, (num_features * hidden_size, mlp_hidden_size),
                                jnp.float32) * 0.02,
        "b1": jnp.zeros((1, mlp_hidden_size), jnp.float32),
        "gamma": jnp.ones((1, mlp_hidden_size), jnp.float32),
        "beta": jnp.zeros((1, mlp_hidden_size), jnp.float32),
        "w2": jax.random.normal(k_w2, (mlp_hidden_size, num_actions), jnp.float32) * 0.02,
        "b2": jnp.zeros((1, num_actions), jnp.float32),
    }


@jax.jit
def bert_oracle_forward(params, input_idx, input_attn_mask, state_idx, target_action_idx):
    """Mirrors BERT_ORACLE.forward with unlabeled_arcs=True.

    Returns (loss, batch_action_logits) with logits stacked as (B, S, A).
    """
    # Stand-in encoder (see TODO above) + identity dropout.
    del input_attn_mask
    bert_output = params["emb"][input_idx]                       # (B, L, H)

    logits = classifier_head_pallas(
        bert_output, state_idx,
        params["w1"], params["b1"], params["gamma"], params["beta"],
        params["w2"], params["b2"])                              # (B, S, A)

    # Cross-entropy, mean over states per batch, then averaged over the batch
    # (matches: loss += F.cross_entropy(...); loss /= len(input_idx)).
    logp = jax.nn.log_softmax(logits, axis=-1)
    nll = -jnp.take_along_axis(logp, target_action_idx[..., None], axis=-1)[..., 0]
    loss = jnp.mean(jnp.mean(nll, axis=-1))
    return loss, logits


def reference_forward(params, input_idx, state_idx, target_action_idx):
    """Pure-JAX reference of the same computation, for validation."""
    bert_output = params["emb"][input_idx]                       # (B, L, H)
    B, L, H = bert_output.shape
    s1 = jnp.take_along_axis(bert_output, state_idx[:, :, 0:1].repeat(H, -1), axis=1)
    s2 = jnp.take_along_axis(bert_output, state_idx[:, :, 1:2].repeat(H, -1), axis=1)
    bf = jnp.take_along_axis(bert_output, state_idx[:, :, 2:3].repeat(H, -1), axis=1)
    feats = jnp.concatenate([s1, s2, bf], axis=-1)               # (B, S, 3H)
    h = feats @ params["w1"] + params["b1"][0]
    mean = h.mean(-1, keepdims=True)
    var = ((h - mean) ** 2).mean(-1, keepdims=True)
    h = (h - mean) / jnp.sqrt(var + LN_EPS)
    h = h * params["gamma"][0] + params["beta"][0]
    h = jnp.maximum(h, 0.0)
    logits = h @ params["w2"] + params["b2"][0]
    logp = jax.nn.log_softmax(logits, axis=-1)
    nll = -jnp.take_along_axis(logp, target_action_idx[..., None], axis=-1)[..., 0]
    loss = jnp.mean(jnp.mean(nll, axis=-1))
    return loss, logits


if __name__ == "__main__":
    # Small, deterministic synthetic problem.
    B, L, H = 2, 8, 32          # batch, seq len, hidden size (stand-in for 768)
    S = 8                       # parser states per sentence
    VOCAB = 1000
    MLP_HIDDEN = 128
    NUM_ACTIONS = 4
    NUM_FEATURES = 3

    key = jax.random.PRNGKey(0)
    k_par, k_tok, k_state, k_tgt = jax.random.split(key, 4)

    params = init_params(k_par, VOCAB, H, MLP_HIDDEN, NUM_ACTIONS, NUM_FEATURES)

    input_idx = jax.random.randint(k_tok, (B, L), 0, VOCAB, dtype=jnp.int32)
    input_attn_mask = jnp.ones((B, L), jnp.int32)
    state_idx = jax.random.randint(k_state, (B, S, NUM_FEATURES), 0, L, dtype=jnp.int32)
    target_action_idx = jax.random.randint(k_tgt, (B, S), 0, NUM_ACTIONS, dtype=jnp.int32)

    loss, action_logits = bert_oracle_forward(
        params, input_idx, input_attn_mask, state_idx, target_action_idx)
    jax.block_until_ready((loss, action_logits))

    ref_loss, ref_logits = reference_forward(params, input_idx, state_idx, target_action_idx)
    np.testing.assert_allclose(np.asarray(action_logits), np.asarray(ref_logits),
                               rtol=1e-5, atol=1e-5)
    np.testing.assert_allclose(float(loss), float(ref_loss), rtol=1e-5, atol=1e-5)

    print("KERNEL_OK")
</pallas_src>

<mosaic_0001>
module attributes {stable_mosaic.version = 11 : i64} {
  func.func @_oracle_head_kernel(%arg0: i32, %arg1: memref<48x1xi32, #tpu.memory_space<vmem>>, %arg2: memref<16x32xf32, #tpu.memory_space<vmem>>, %arg3: memref<96x128xf32, #tpu.memory_space<vmem>>, %arg4: memref<1x128xf32, #tpu.memory_space<vmem>>, %arg5: memref<1x128xf32, #tpu.memory_space<vmem>>, %arg6: memref<1x128xf32, #tpu.memory_space<vmem>>, %arg7: memref<128x128xf32, #tpu.memory_space<vmem>>, %arg8: memref<1x128xf32, #tpu.memory_space<vmem>>, %arg9: memref<16x128xf32, #tpu.memory_space<vmem>>) attributes {dimension_semantics = [#tpu.dimension_semantics<parallel>], iteration_bounds = array<i64: 1>, scalar_prefetch = 0 : i64, scratch_operands = 0 : i64, tpu.core_type = #tpu.core_type<tc>, window_params = [{transform_indices = @transform_0, window_bounds = array<i64: 48, 1>}, {pipeline_mode = #tpu.pipeline_mode<synchronous>, transform_indices = @transform_1, window_bounds = array<i64: 16, 32>}, {pipeline_mode = #tpu.pipeline_mode<synchronous>, transform_indices = @transform_2, window_bounds = array<i64: 96, 128>}, {pipeline_mode = #tpu.pipeline_mode<synchronous>, transform_indices = @transform_3, window_bounds = array<i64: 1, 128>}, {pipeline_mode = #tpu.pipeline_mode<synchronous>, transform_indices = @transform_4, window_bounds = array<i64: 1, 128>}, {pipeline_mode = #tpu.pipeline_mode<synchronous>, transform_indices = @transform_5, window_bounds = array<i64: 1, 128>}, {pipeline_mode = #tpu.pipeline_mode<synchronous>, transform_indices = @transform_6, window_bounds = array<i64: 128, 128>}, {pipeline_mode = #tpu.pipeline_mode<synchronous>, transform_indices = @transform_7, window_bounds = array<i64: 1, 128>}, {transform_indices = @transform_8, window_bounds = array<i64: 16, 128>}]} {
    %c0 = arith.constant 0 : index
    %c0_0 = arith.constant 0 : index
    %0 = vector.load %arg1[%c0, %c0_0] : memref<48x1xi32, #tpu.memory_space<vmem>>, vector<48x1xi32>
    %1 = tpu.iota {dimensions = array<i32: 1>} : vector<48x16xi32>
    %2 = vector.broadcast %0 : vector<48x1xi32> to vector<48x16xi32>
    %3 = arith.cmpi eq, %1, %2 : vector<48x16xi32>
    %4 = arith.extui %3 : vector<48x16xi1> to vector<48x16xi32>
    %5 = arith.sitofp %4 : vector<48x16xi32> to vector<48x16xf32>
    %c0_1 = arith.constant 0 : index
    %c0_2 = arith.constant 0 : index
    %6 = vector.load %arg2[%c0_1, %c0_2] : memref<16x32xf32, #tpu.memory_space<vmem>>, vector<16x32xf32>
    %cst = arith.constant dense<0.000000e+00> : vector<48x32xf32>
    %7 = tpu.matmul %5, %6, %cst {dimension_numbers = #tpu.dot_dimension_numbers<[1], [0], [0], [1], [0, 0, 1, 1], [], []>} : vector<48x16xf32>, vector<16x32xf32>, vector<48x32xf32> -> vector<48x32xf32>
    %8 = vector.extract_strided_slice %7 {offsets = [0, 0], sizes = [16, 32], strides = [1, 1]} : vector<48x32xf32> to vector<16x32xf32>
    %9 = vector.extract_strided_slice %7 {offsets = [16, 0], sizes = [16, 32], strides = [1, 1]} : vector<48x32xf32> to vector<16x32xf32>
    %10 = vector.extract_strided_slice %7 {offsets = [32, 0], sizes = [16, 32], strides = [1, 1]} : vector<48x32xf32> to vector<16x32xf32>
    %11 = tpu.concatenate %8, %9, %10 in 1 : vector<16x32xf32>, vector<16x32xf32>, vector<16x32xf32> -> vector<16x96xf32>
    %c0_3 = arith.constant 0 : index
    %c0_4 = arith.constant 0 : index
    %12 = vector.load %arg3[%c0_3, %c0_4] : memref<96x128xf32, #tpu.memory_space<vmem>>, vector<96x128xf32>
    %cst_5 = arith.constant dense<0.000000e+00> : vector<16x128xf32>
    %13 = tpu.matmul %11, %12, %cst_5 {dimension_numbers = #tpu.dot_dimension_numbers<[1], [0], [0], [1], [0, 0, 1, 1], [], []>} : vector<16x96xf32>, vector<96x128xf32>, vector<16x128xf32> -> vector<16x128xf32>
    %c0_6 = arith.constant 0 : index
    %c0_7 = arith.constant 0 : index
    %14 = vector.load %arg4[%c0_6, %c0_7] : memref<1x128xf32, #tpu.memory_space<vmem>>, vector<1x128xf32>
    %15 = vector.broadcast %14 : vector<1x128xf32> to vector<16x128xf32>
    %16 = arith.addf %13, %15 : vector<16x128xf32>
    %cst_8 = arith.constant dense<0.000000e+00> : vector<16xf32>
    %17 = vector.multi_reduction <add>, %16, %cst_8 [1] : vector<16x128xf32> to vector<16xf32>
    %18 = vector.shape_cast %17 : vector<16xf32> to vector<16x1xf32>
    %cst_9 = arith.constant 1.280000e+02 : f32
    %19 = vector.broadcast %cst_9 : f32 to vector<16x1xf32>
    %20 = arith.divf %18, %19 : vector<16x1xf32>
    %21 = vector.broadcast %20 : vector<16x1xf32> to vector<16x128xf32>
    %22 = arith.subf %16, %21 : vector<16x128xf32>
    %23 = arith.mulf %22, %22 : vector<16x128xf32>
    %cst_10 = arith.constant dense<0.000000e+00> : vector<16xf32>
    %24 = vector.multi_reduction <add>, %23, %cst_10 [1] : vector<16x128xf32> to vector<16xf32>
    %25 = vector.shape_cast %24 : vector<16xf32> to vector<16x1xf32>
    %cst_11 = arith.constant 1.280000e+02 : f32
    %26 = vector.broadcast %cst_11 : f32 to vector<16x1xf32>
    %27 = arith.divf %25, %26 : vector<16x1xf32>
    %cst_12 = arith.constant 9.99999974E-6 : f32
    %28 = vector.broadcast %cst_12 : f32 to vector<16x1xf32>
    %29 = arith.addf %27, %28 : vector<16x1xf32>
    %30 = math.rsqrt %29 : vector<16x1xf32>
    %31 = vector.broadcast %30 : vector<16x1xf32> to vector<16x128xf32>
    %32 = arith.mulf %22, %31 : vector<16x128xf32>
    %c0_13 = arith.constant 0 : index
    %c0_14 = arith.constant 0 : index
    %33 = vector.load %arg5[%c0_13, %c0_14] : memref<1x128xf32, #tpu.memory_space<vmem>>, vector<1x128xf32>
    %34 = vector.broadcast %33 : vector<1x128xf32> to vector<16x128xf32>
    %35 = arith.mulf %32, %34 : vector<16x128xf32>
    %c0_15 = arith.constant 0 : index
    %c0_16 = arith.constant 0 : index
    %36 = vector.load %arg6[%c0_15, %c0_16] : memref<1x128xf32, #tpu.memory_space<vmem>>, vector<1x128xf32>
    %37 = vector.broadcast %36 : vector<1x128xf32> to vector<16x128xf32>
    %38 = arith.addf %35, %37 : vector<16x128xf32>
    %cst_17 = arith.constant 0.000000e+00 : f32
    %39 = vector.broadcast %cst_17 : f32 to vector<16x128xf32>
    %40 = arith.maximumf %38, %39 : vector<16x128xf32>
    %c0_18 = arith.constant 0 : index
    %c0_19 = arith.constant 0 : index
    %41 = vector.load %arg7[%c0_18, %c0_19] : memref<128x128xf32, #tpu.memory_space<vmem>>, vector<128x128xf32>
    %cst_20 = arith.constant dense<0.000000e+00> : vector<16x128xf32>
    %42 = tpu.matmul %40, %41, %cst_20 {dimension_numbers = #tpu.dot_dimension_numbers<[1], [0], [0], [1], [0, 0, 1, 1], [], []>} : vector<16x128xf32>, vector<128x128xf32>, vector<16x128xf32> -> vector<16x128xf32>
    %c0_21 = arith.constant 0 : index
    %c0_22 = arith.constant 0 : index
    %43 = vector.load %arg8[%c0_21, %c0_22] : memref<1x128xf32, #tpu.memory_space<vmem>>, vector<1x128xf32>
    %44 = vector.broadcast %43 : vector<1x128xf32> to vector<16x128xf32>
    %45 = arith.addf %42, %44 : vector<16x128xf32>
    %c0_23 = arith.constant 0 : index
    %c0_24 = arith.constant 0 : index
    %46 = vector.load %arg9[%c0_23, %c0_24] : memref<16x128xf32, #tpu.memory_space<vmem>>, vector<16x128xf32>
    tpu.vector_store %arg9[%c0_23, %c0_24], %45 {strides = array<i32>} : memref<16x128xf32, #tpu.memory_space<vmem>>, vector<16x128xf32>,
    return
  }
  func.func @transform_0(%arg0: i32) -> (i32, i32) {
    %c0_i32 = arith.constant 0 : i32
    %c0_i32_0 = arith.constant 0 : i32
    return %arg0, %c0_i32 : i32, i32
  }
  func.func @transform_1(%arg0: i32) -> (i32, i32) {
    %c0_i32 = arith.constant 0 : i32
    %c0_i32_0 = arith.constant 0 : i32
    %c0_i32_1 = arith.constant 0 : i32
    return %c0_i32, %c0_i32_0 : i32, i32
  }
  func.func @transform_2(%arg0: i32) -> (i32, i32) {
    %c0_i32 = arith.constant 0 : i32
    %c0_i32_0 = arith.constant 0 : i32
    %c0_i32_1 = arith.constant 0 : i32
    return %c0_i32, %c0_i32_0 : i32, i32
  }
  func.func @transform_3(%arg0: i32) -> (i32, i32) {
    %c0_i32 = arith.constant 0 : i32
    %c0_i32_0 = arith.constant 0 : i32
    %c0_i32_1 = arith.constant 0 : i32
    return %c0_i32, %c0_i32_0 : i32, i32
  }
  func.func @transform_4(%arg0: i32) -> (i32, i32) {
    %c0_i32 = arith.constant 0 : i32
    %c0_i32_0 = arith.constant 0 : i32
    %c0_i32_1 = arith.constant 0 : i32
    return %c0_i32, %c0_i32_0 : i32, i32
  }
  func.func @transform_5(%arg0: i32) -> (i32, i32) {
    %c0_i32 = arith.constant 0 : i32
    %c0_i32_0 = arith.constant 0 : i32
    %c0_i32_1 = arith.constant 0 : i32
    return %c0_i32, %c0_i32_0 : i32, i32
  }
  func.func @transform_6(%arg0: i32) -> (i32, i32) {
    %c0_i32 = arith.constant 0 : i32
    %c0_i32_0 = arith.constant 0 : i32
    %c0_i32_1 = arith.constant 0 : i32
    return %c0_i32, %c0_i32_0 : i32, i32
  }
  func.func @transform_7(%arg0: i32) -> (i32, i32) {
    %c0_i32 = arith.constant 0 : i32
    %c0_i32_0 = arith.constant 0 : i32
    %c0_i32_1 = arith.constant 0 : i32
    return %c0_i32, %c0_i32_0 : i32, i32
  }
  func.func @transform_8(%arg0: i32) -> (i32, i32) {
    %c0_i32 = arith.constant 0 : i32
    %c0_i32_0 = arith.constant 0 : i32
    return %arg0, %c0_i32 : i32, i32
  }
}

</mosaic_0001>

<llo_original>
// kernel: bert_oracle_forward.1
$region0: #{bert_oracle_forward.1}
  #allocation0 [shape = 'u32[]', space=smem, size = 0x4, offset = 0x4, fixed_abs, tag = 'smem constant byte address 0x4 - core index']
  #allocation1 [shape = 'u32[144,128]{1,0:T(1,128)}', space=vmem, size = 0x12000, scoped, tag = 'internal scratch']
  %s0 = inlined_call_operand.vmem [shape: s32[48,1], index: 0, kind: input, shape index: {}]
  %s1 = inlined_call_operand.vmem [shape: f32[16,32], index: 1, kind: input, shape index: {}]
  %s2 = inlined_call_operand.vmem [shape: f32[96,128], index: 2, kind: input, shape index: {}]
  %s3 = inlined_call_operand.vmem [shape: f32[1,128], index: 3, kind: input, shape index: {}]
  %s4 = inlined_call_operand.vmem [shape: f32[1,128], index: 4, kind: input, shape index: {}]
  %s5 = inlined_call_operand.vmem [shape: f32[1,128], index: 5, kind: input, shape index: {}]
  %s6 = inlined_call_operand.vmem [shape: f32[128,128], index: 6, kind: input, shape index: {}]
  %s7 = inlined_call_operand.vmem [shape: f32[1,128], index: 7, kind: input, shape index: {}]
  %s8 = inlined_call_operand.vmem [shape: f32[16,128], index: 8, kind: output, shape index: {}]
  %s9 = sld [smem:[#allocation0]]
  $region42: #{bert_oracle_forward.1} parent=0
    _
  %s11 = ssub.s32 1, %s9
  %s12 = scalar_select 0, %s11, %s9
  // Predicated region
  $region2: #{bert_oracle_forward.1} parent=0 // pred_check
    _
  $region3: #{bert_oracle_forward.1} parent=0 // pred_check_branch
    %14 = sbr.rel (0) target = $region5
  $region4: #{bert_oracle_forward.1} parent=0 // pred_region
    _
  $region5: #{bert_oracle_forward.1} parent=0 // pred_fallthru
    _
  // Predicated region
  $region6: #{bert_oracle_forward.1} parent=0 // pred_check
    _
  $region7: #{bert_oracle_forward.1} parent=0 // pred_check_branch
    %16 = sbr.rel (0) target = $region9
  $region8: #{bert_oracle_forward.1} parent=0 // pred_region
    _
  $region9: #{bert_oracle_forward.1} parent=0 // pred_fallthru
    _
  // Predicated region
  $region10: #{bert_oracle_forward.1} parent=0 // pred_check
    _
  $region11: #{bert_oracle_forward.1} parent=0 // pred_check_branch
    %18 = sbr.rel (0) target = $region13
  $region12: #{bert_oracle_forward.1} parent=0 // pred_region
    _
  $region13: #{bert_oracle_forward.1} parent=0 // pred_fallthru
    _
  // Predicated region
  $region14: #{bert_oracle_forward.1} parent=0 // pred_check
    _
  $region15: #{bert_oracle_forward.1} parent=0 // pred_check_branch
    %20 = sbr.rel (0) target = $region17
  $region16: #{bert_oracle_forward.1} parent=0 // pred_region
    _
  $region17: #{bert_oracle_forward.1} parent=0 // pred_fallthru
    _
  // Predicated region
  $region18: #{bert_oracle_forward.1} parent=0 // pred_check
    _
  $region19: #{bert_oracle_forward.1} parent=0 // pred_check_branch
    %22 = sbr.rel (0) target = $region21
  $region20: #{bert_oracle_forward.1} parent=0 // pred_region
    _
  $region21: #{bert_oracle_forward.1} parent=0 // pred_fallthru
    _
  // Predicated region
  $region22: #{bert_oracle_forward.1} parent=0 // pred_check
    _
  $region23: #{bert_oracle_forward.1} parent=0 // pred_check_branch
    %24 = sbr.rel (0) target = $region25
  $region24: #{bert_oracle_forward.1} parent=0 // pred_region
    _
  $region25: #{bert_oracle_forward.1} parent=0 // pred_fallthru
    _
  // Predicated region
  $region26: #{bert_oracle_forward.1} parent=0 // pred_check
    _
  $region27: #{bert_oracle_forward.1} parent=0 // pred_check_branch
    %26 = sbr.rel (0) target = $region29
  $region28: #{bert_oracle_forward.1} parent=0 // pred_region
    _
  $region29: #{bert_oracle_forward.1} parent=0 // pred_fallthru
    _
  // Predicated region
  $region30: #{bert_oracle_forward.1} parent=0 // pred_check
    _
  $region31: #{bert_oracle_forward.1} parent=0 // pred_check_branch
    %28 = sbr.rel (0) target = $region33
  $region32: #{bert_oracle_forward.1} parent=0 // pred_region
    _
  $region33: #{bert_oracle_forward.1} parent=0 // pred_fallthru
    _
  %v29 = vld [vmem:[%s0] sm:$0xff]
  %v30 = vld [vmem:[%s0 + $0x8] sm:$0xff]
  %v31 = vld [vmem:[%s0 + $0x10] sm:$0xff]
  %v32 = vld [vmem:[%s0 + $0x18] sm:$0xff]
  %v33 = vld [vmem:[%s0 + $0x20] sm:$0xff]
  %v34 = vld [vmem:[%s0 + $0x28] sm:$0xff]
  %v35 = vlaneseq
  %v36 = vand.u32 %v35, 127
  %37 = vset.pattern.permute.xlu0 0
  %38 = vperm.xlu0 %37, %v29
  %v39 = vpop.permute.xlu0 %38
  %40 = vset.pattern.permute.xlu0 0
  %41 = vperm.xlu0 %40, %v30
  %v42 = vpop.permute.xlu0 %41
  %43 = vset.pattern.permute.xlu0 0
  %44 = vperm.xlu0 %43, %v31
  %v45 = vpop.permute.xlu0 %44
  %46 = vset.pattern.permute.xlu0 0
  %47 = vperm.xlu0 %46, %v32
  %v48 = vpop.permute.xlu0 %47
  %49 = vset.pattern.permute.xlu0 0
  %50 = vperm.xlu0 %49, %v33
  %v51 = vpop.permute.xlu0 %50
  %52 = vset.pattern.permute.xlu0 0
  %53 = vperm.xlu0 %52, %v34
  %v54 = vpop.permute.xlu0 %53
  %vm55 = vcmp.eq.s32.totalorder %v36, %v39
  %vm56 = vcmp.eq.s32.totalorder %v36, %v42
  %vm57 = vcmp.eq.s32.totalorder %v36, %v45
  %vm58 = vcmp.eq.s32.totalorder %v36, %v48
  %vm59 = vcmp.eq.s32.totalorder %v36, %v51
  %vm60 = vcmp.eq.s32.totalorder %v36, %v54
  %v61 = vsel %vm55, 1, 0
  %v62 = vsel %vm56, 1, 0
  %v63 = vsel %vm57, 1, 0
  %v64 = vsel %vm58, 1, 0
  %v65 = vsel %vm59, 1, 0
  %v66 = vsel %vm60, 1, 0
  %v67 = vcvt.s32.f32 %v61
  %v68 = vcvt.s32.f32 %v62
  %v69 = vcvt.s32.f32 %v63
  %v70 = vcvt.s32.f32 %v64
  %v71 = vcvt.s32.f32 %v65
  %v72 = vcvt.s32.f32 %v66
  %v73 = vld [vmem:[%s1] sm:$0xff]
  %v74 = vld [vmem:[%s1 + $0x8] sm:$0xff]
  %vm75 = vcmask 130048
  %v77 = vsel %vm75, %v67, 0
  %v80 = vsel %vm75, %v68, 0
  %v83 = vsel %vm75, %v69, 0
  %v86 = vsel %vm75, %v70, 0
  %v89 = vsel %vm75, %v71, 0
  %v92 = vsel %vm75, %v72, 0
  %94 = vmatprep.subr.mxu0 0.0
  %95 = vmatpush1.msra.mxu0 %v73
  %96 = vmatprep.subr.mxu0 0.0
  %97 = vmatpush1.msra.mxu0 %v74
  %98 = vmatprep.subr.mxu0 0.0
  %99 = vmatpush1.msra.mxu0 0.0
  %100 = vmatprep.subr.mxu0 0.0
  %101 = vmatpush1.msra.mxu0 0.0
  %102 = vmatprep.subr.mxu0 0.0
  %103 = vmatpush1.msra.mxu0 0.0
  %104 = vmatprep.subr.mxu0 0.0
  %105 = vmatpush1.msra.mxu0 0.0
  %106 = vmatprep.subr.mxu0 0.0
  %107 = vmatpush1.msra.mxu0 0.0
  %108 = vmatprep.subr.mxu0 0.0
  %109 = vmatpush1.msra.mxu0 0.0
  %110 = vmatprep.subr.mxu0 0.0
  %111 = vmatpush1.msra.mxu0 0.0
  %112 = vmatprep.subr.mxu0 0.0
  %113 = vmatpush1.msra.mxu0 0.0
  %114 = vmatprep.subr.mxu0 0.0
  %115 = vmatpush1.msra.mxu0 0.0
  %116 = vmatprep.subr.mxu0 0.0
  %117 = vmatpush1.msra.mxu0 0.0
  %118 = vmatprep.subr.mxu0 0.0
  %119 = vmatpush1.msra.mxu0 0.0
  %120 = vmatprep.subr.mxu0 0.0
  %121 = vmatpush1.msra.mxu0 0.0
  %122 = vmatprep.subr.mxu0 0.0
  %123 = vmatpush1.msra.mxu0 0.0
  %124 = vmatprep.subr.mxu0 0.0
  %125 = vmatpush1.msra.mxu0 0.0
  %126 = vmatprep.subr.mxu0 0.0
  %127 = vmatpush1.msra.mxu0 0.0
  %128 = vmatprep.subr.mxu0 0.0
  %129 = vmatpush1.msra.mxu0 0.0
  %130 = vmatprep.subr.mxu0 0.0
  %131 = vmatpush1.msra.mxu0 0.0
  %132 = vmatprep.subr.mxu0 0.0
  %133 = vmatpush1.msra.mxu0 0.0
  %134 = vmatprep.subr.mxu0 0.0
  %135 = vmatpush1.msra.mxu0 0.0
  %136 = vmatprep.subr.mxu0 0.0
  %137 = vmatpush1.msra.mxu0 0.0
  %138 = vmatprep.subr.mxu0 0.0
  %139 = vmatpush1.msra.mxu0 0.0
  %140 = vmatprep.subr.mxu0 0.0
  %141 = vmatpush1.msra.mxu0 0.0
  %142 = vmatprep.subr.mxu0 0.0
  %143 = vmatpush1.msra.mxu0 0.0
  %144 = vmatprep.subr.mxu0 0.0
  %145 = vmatpush1.msra.mxu0 0.0
  %146 = vmatprep.subr.mxu0 0.0
  %147 = vmatpush1.msra.mxu0 0.0
  %148 = vmatprep.subr.mxu0 0.0
  %149 = vmatpush1.msra.mxu0 0.0
  %150 = vmatprep.subr.mxu0 0.0
  %151 = vmatpush1.msra.mxu0 0.0
  %152 = vmatprep.subr.mxu0 0.0
  %153 = vmatpush1.msra.mxu0 0.0
  %154 = vmatprep.subr.mxu0 0.0
  %155 = vmatpush1.msra.mxu0 0.0
  %156 = vmatprep.subr.mxu0 0.0
  %157 = vmatpush1.msra.mxu0 0.0
  %158 = vmatprep.mubr.f32.mxu0 0.0
  %159 = vmatmul.mubr.f32.gmra.mrb[0].mxu0 %v77
  %v160 = vpop.f32.mrb[0].mxu0
  %v161 = vadd.f32 0.0, %v160
  %v162 = vpop.f32.mrb[0].mxu0
  %163 = vmatprep.mubr.f32.mxu0 0.0
  %164 = vmatmul.mubr.f32.gmra.mrb[0].mxu0 %v80
  %v165 = vpop.f32.mrb[0].mxu0
  %v166 = vadd.f32 0.0, %v165
  %v167 = vpop.f32.mrb[0].mxu0
  %168 = vmatprep.mubr.f32.mxu0 0.0
  %169 = vmatmul.mubr.f32.gmra.mrb[0].mxu0 %v83
  %v170 = vpop.f32.mrb[0].mxu0
  %v171 = vadd.f32 0.0, %v170
  %v172 = vpop.f32.mrb[0].mxu0
  %173 = vmatprep.mubr.f32.mxu0 0.0
  %174 = vmatmul.mubr.f32.gmra.mrb[0].mxu0 %v86
  %v175 = vpop.f32.mrb[0].mxu0
  %v176 = vadd.f32 0.0, %v175
  %v177 = vpop.f32.mrb[0].mxu0
  %178 = vmatprep.mubr.f32.mxu0 0.0
  %179 = vmatmul.mubr.f32.gmra.mrb[0].mxu0 %v89
  %v180 = vpop.f32.mrb[0].mxu0
  %v181 = vadd.f32 0.0, %v180
  %v182 = vpop.f32.mrb[0].mxu0
  %183 = vmatprep.mubr.f32.mxu0 0.0
  %184 = vmatmul.mubr.f32.gmra.mrb[0].mxu0 %v92
  %v185 = vpop.f32.mrb[0].mxu0
  %v186 = vadd.f32 0.0, %v185
  %v187 = vpop.f32.mrb[0].mxu0
  %188 = vdwg.mxu0
  %191 = vrot.lane.b32.xlu0 %v171, 32
  %v192 = vpop.permute.xlu0 %191
  %193 = vrot.lane.b32.xlu0 %v176, 32
  %v194 = vpop.permute.xlu0 %193
  %199 = vrot.lane.b32.xlu0 %v181, 64
  %v200 = vpop.permute.xlu0 %199
  %201 = vrot.lane.b32.xlu0 %v186, 64
  %v202 = vpop.permute.xlu0 %201
  %vm205 = vcmask 261120
  %v206 = vsel %vm205, %v161, %v192
  %v207 = vsel %vm205, %v166, %v194
  %vm208 = vcmask 523264
  %v209 = vsel %vm208, %v206, %v200
  %v210 = vsel %vm208, %v207, %v202
  %v211 = vld [vmem:[%s2] sm:$0xff]
  %v212 = vld [vmem:[%s2 + $0x8] sm:$0xff]
  %v213 = vld [vmem:[%s2 + $0x10] sm:$0xff]
  %v214 = vld [vmem:[%s2 + $0x18] sm:$0xff]
  %v215 = vld [vmem:[%s2 + $0x20] sm:$0xff]
  %v216 = vld [vmem:[%s2 + $0x28] sm:$0xff]
  %v217 = vld [vmem:[%s2 + $0x30] sm:$0xff]
  %v218 = vld [vmem:[%s2 + $0x38] sm:$0xff]
  %v219 = vld [vmem:[%s2 + $0x40] sm:$0xff]
  %v220 = vld [vmem:[%s2 + $0x48] sm:$0xff]
  %v221 = vld [vmem:[%s2 + $0x50] sm:$0xff]
  %v222 = vld [vmem:[%s2 + $0x58] sm:$0xff]
  %v223 = vld [vmem:[%s3] sm:$0x1]
  %v225 = vlaneseq
  %v226 = vshrl.u32 %v225, 7
  %v227 = vsub.s32 0, %v226
  %v228 = vrot.slane %v223, %v227
  %vm230 = vcmask 785408
  %v232 = vsel %vm230, %v209, 0
  %v235 = vsel %vm230, %v210, 0
  %237 = vmatprep.subr.mxu0 0.0
  %238 = vmatpush1.msra.mxu0 %v211
  %239 = vmatprep.subr.mxu0 0.0
  %240 = vmatpush1.msra.mxu0 %v212
  %241 = vmatprep.subr.mxu0 0.0
  %242 = vmatpush1.msra.mxu0 %v213
  %243 = vmatprep.subr.mxu0 0.0
  %244 = vmatpush1.msra.mxu0 %v214
  %245 = vmatprep.subr.mxu0 0.0
  %246 = vmatpush1.msra.mxu0 %v215
  %247 = vmatprep.subr.mxu0 0.0
  %248 = vmatpush1.msra.mxu0 %v216
  %249 = vmatprep.subr.mxu0 0.0
  %250 = vmatpush1.msra.mxu0 %v217
  %251 = vmatprep.subr.mxu0 0.0
  %252 = vmatpush1.msra.mxu0 %v218
  %253 = vmatprep.subr.mxu0 0.0
  %254 = vmatpush1.msra.mxu0 %v219
  %255 = vmatprep.subr.mxu0 0.0
  %256 = vmatpush1.msra.mxu0 %v220
  %257 = vmatprep.subr.mxu0 0.0
  %258 = vmatpush1.msra.mxu0 %v221
  %259 = vmatprep.subr.mxu0 0.0
  %260 = vmatpush1.msra.mxu0 %v222
  %261 = vmatprep.subr.mxu0 0.0
  %262 = vmatpush1.msra.mxu0 0.0
  %263 = vmatprep.subr.mxu0 0.0
  %264 = vmatpush1.msra.mxu0 0.0
  %265 = vmatprep.subr.mxu0 0.0
  %266 = vmatpush1.msra.mxu0 0.0
  %267 = vmatprep.subr.mxu0 0.0
  %268 = vmatpush1.msra.mxu0 0.0
  %269 = vmatprep.subr.mxu0 0.0
  %270 = vmatpush1.msra.mxu0 0.0
  %271 = vmatprep.subr.mxu0 0.0
  %272 = vmatpush1.msra.mxu0 0.0
  %273 = vmatprep.subr.mxu0 0.0
  %274 = vmatpush1.msra.mxu0 0.0
  %275 = vmatprep.subr.mxu0 0.0
  %276 = vmatpush1.msra.mxu0 0.0
  %277 = vmatprep.subr.mxu0 0.0
  %278 = vmatpush1.msra.mxu0 0.0
  %279 = vmatprep.subr.mxu0 0.0
  %280 = vmatpush1.msra.mxu0 0.0
  %281 = vmatprep.subr.mxu0 0.0
  %282 = vmatpush1.msra.mxu0 0.0
  %283 = vmatprep.subr.mxu0 0.0
  %284 = vmatpush1.msra.mxu0 0.0
  %285 = vmatprep.subr.mxu0 0.0
  %286 = vmatpush1.msra.mxu0 0.0
  %287 = vmatprep.subr.mxu0 0.0
  %288 = vmatpush1.msra.mxu0 0.0
  %289 = vmatprep.subr.mxu0 0.0
  %290 = vmatpush1.msra.mxu0 0.0
  %291 = vmatprep.subr.mxu0 0.0
  %292 = vmatpush1.msra.mxu0 0.0
  %293 = vmatprep.subr.mxu0 0.0
  %294 = vmatpush1.msra.mxu0 0.0
  %295 = vmatprep.subr.mxu0 0.0
  %296 = vmatpush1.msra.mxu0 0.0
  %297 = vmatprep.subr.mxu0 0.0
  %298 = vmatpush1.msra.mxu0 0.0
  %299 = vmatprep.subr.mxu0 0.0
  %300 = vmatpush1.msra.mxu0 0.0
  %301 = vmatprep.mubr.f32.mxu0 0.0
  %302 = vmatmul.mubr.f32.gmra.mrb[0].mxu0 %v232
  %v303 = vpop.f32.mrb[0].mxu0
  %v304 = vadd.f32 %v228, %v303
  %v305 = vpop.f32.mrb[0].mxu0
  %306 = vmatprep.mubr.f32.mxu0 0.0
  %307 = vmatmul.mubr.f32.gmra.mrb[0].mxu0 %v235
  %v308 = vpop.f32.mrb[0].mxu0
  %v309 = vadd.f32 %v228, %v308
  %v310 = vpop.f32.mrb[0].mxu0
  %311 = vdwg.mxu0
  %312 = vadd.xlane.f32.xlu0 %v304
  %v313 = vpop.xlane.xlu0 %312
  %314 = vadd.xlane.f32.xlu0 %v309
  %v315 = vpop.xlane.xlu0 %314
  %v316 = vrcp.pop 128.0
  %v317 = vmul.f32 %v313, %v316
  %v318 = vmul.f32 %v315, %v316
  %v319 = vsub.f32 %v304, %v317
  %v320 = vsub.f32 %v309, %v318
  %v321 = vmul.f32 %v319, %v319
  %v322 = vmul.f32 %v320, %v320
  %323 = vadd.xlane.f32.xlu0 %v321
  %v324 = vpop.xlane.xlu0 %323
  %325 = vadd.xlane.f32.xlu0 %v322
  %v326 = vpop.xlane.xlu0 %325
  %v327 = vmul.f32 %v324, %v316
  %v328 = vmul.f32 %v326, %v316
  %v329 = vadd.f32 %v327, 1e-05
  %v330 = vadd.f32 %v328, 1e-05
  %v331 = vrsqrt.pop %v329
  %v332 = vrsqrt.pop %v330
  %v333 = vmul.f32 %v319, %v331
  %v334 = vmul.f32 %v320, %v332
  %v335 = vld [vmem:[%s4] sm:$0x1]
  %v337 = vlaneseq
  %v338 = vshrl.u32 %v337, 7
  %v339 = vsub.s32 0, %v338
  %v340 = vrot.slane %v335, %v339
  %v342 = vmul.f32 %v333, %v340
  %v343 = vmul.f32 %v334, %v340
  %v344 = vld [vmem:[%s5] sm:$0x1]
  %v346 = vlaneseq
  %v347 = vshrl.u32 %v346, 7
  %v348 = vsub.s32 0, %v347
  %v349 = vrot.slane %v344, %v348
  %v351 = vadd.f32 %v342, %v349
  %v352 = vadd.f32 %v343, %v349
  %v353 = vmax.f32 %v351, 0.0
  %v354 = vmax.f32 %v352, 0.0
  %v355 = vld [vmem:[%s6] sm:$0xff]
  %v356 = vld [vmem:[%s6 + $0x8] sm:$0xff]
  %v357 = vld [vmem:[%s6 + $0x10] sm:$0xff]
  %v358 = vld [vmem:[%s6 + $0x18] sm:$0xff]
  %v359 = vld [vmem:[%s6 + $0x20] sm:$0xff]
  %v360 = vld [vmem:[%s6 + $0x28] sm:$0xff]
  %v361 = vld [vmem:[%s6 + $0x30] sm:$0xff]
  %v362 = vld [vmem:[%s6 + $0x38] sm:$0xff]
  %v363 = vld [vmem:[%s6 + $0x40] sm:$0xff]
  %v364 = vld [vmem:[%s6 + $0x48] sm:$0xff]
  %v365 = vld [vmem:[%s6 + $0x50] sm:$0xff]
  %v366 = vld [vmem:[%s6 + $0x58] sm:$0xff]
  %v367 = vld [vmem:[%s6 + $0x60] sm:$0xff]
  %v368 = vld [vmem:[%s6 + $0x68] sm:$0xff]
  %v369 = vld [vmem:[%s6 + $0x70] sm:$0xff]
  %v370 = vld [vmem:[%s6 + $0x78] sm:$0xff]
  %v371 = vld [vmem:[%s7] sm:$0x1]
  %v373 = vlaneseq
  %v374 = vshrl.u32 %v373, 7
  %v375 = vsub.s32 0, %v374
  %v376 = vrot.slane %v371, %v375
  %378 = vmatprep.subr.mxu0 0.0
  %379 = vmatpush1.msra.mxu0 %v355
  %380 = vmatprep.subr.mxu0 0.0
  %381 = vmatpush1.msra.mxu0 %v356
  %382 = vmatprep.subr.mxu0 0.0
  %383 = vmatpush1.msra.mxu0 %v357
  %384 = vmatprep.subr.mxu0 0.0
  %385 = vmatpush1.msra.mxu0 %v358
  %386 = vmatprep.subr.mxu0 0.0
  %387 = vmatpush1.msra.mxu0 %v359
  %388 = vmatprep.subr.mxu0 0.0
  %389 = vmatpush1.msra.mxu0 %v360
  %390 = vmatprep.subr.mxu0 0.0
  %391 = vmatpush1.msra.mxu0 %v361
  %392 = vmatprep.subr.mxu0 0.0
  %393 = vmatpush1.msra.mxu0 %v362
  %394 = vmatprep.subr.mxu0 0.0
  %395 = vmatpush1.msra.mxu0 %v363
  %396 = vmatprep.subr.mxu0 0.0
  %397 = vmatpush1.msra.mxu0 %v364
  %398 = vmatprep.subr.mxu0 0.0
  %399 = vmatpush1.msra.mxu0 %v365
  %400 = vmatprep.subr.mxu0 0.0
  %401 = vmatpush1.msra.mxu0 %v366
  %402 = vmatprep.subr.mxu0 0.0
  %403 = vmatpush1.msra.mxu0 %v367
  %404 = vmatprep.subr.mxu0 0.0
  %405 = vmatpush1.msra.mxu0 %v368
  %406 = vmatprep.subr.mxu0 0.0
  %407 = vmatpush1.msra.mxu0 %v369
  %408 = vmatprep.subr.mxu0 0.0
  %409 = vmatpush1.msra.mxu0 %v370
  %410 = vmatprep.subr.mxu0 0.0
  %411 = vmatpush1.msra.mxu0 0.0
  %412 = vmatprep.subr.mxu0 0.0
  %413 = vmatpush1.msra.mxu0 0.0
  %414 = vmatprep.subr.mxu0 0.0
  %415 = vmatpush1.msra.mxu0 0.0
  %416 = vmatprep.subr.mxu0 0.0
  %417 = vmatpush1.msra.mxu0 0.0
  %418 = vmatprep.subr.mxu0 0.0
  %419 = vmatpush1.msra.mxu0 0.0
  %420 = vmatprep.subr.mxu0 0.0
  %421 = vmatpush1.msra.mxu0 0.0
  %422 = vmatprep.subr.mxu0 0.0
  %423 = vmatpush1.msra.mxu0 0.0
  %424 = vmatprep.subr.mxu0 0.0
  %425 = vmatpush1.msra.mxu0 0.0
  %426 = vmatprep.subr.mxu0 0.0
  %427 = vmatpush1.msra.mxu0 0.0
  %428 = vmatprep.subr.mxu0 0.0
  %429 = vmatpush1.msra.mxu0 0.0
  %430 = vmatprep.subr.mxu0 0.0
  %431 = vmatpush1.msra.mxu0 0.0
  %432 = vmatprep.subr.mxu0 0.0
  %433 = vmatpush1.msra.mxu0 0.0
  %434 = vmatprep.subr.mxu0 0.0
  %435 = vmatpush1.msra.mxu0 0.0
  %436 = vmatprep.subr.mxu0 0.0
  %437 = vmatpush1.msra.mxu0 0.0
  %438 = vmatprep.subr.mxu0 0.0
  %439 = vmatpush1.msra.mxu0 0.0
  %440 = vmatprep.subr.mxu0 0.0
  %441 = vmatpush1.msra.mxu0 0.0
  %442 = vmatprep.mubr.f32.mxu0 0.0
  %443 = vmatmul.mubr.f32.gmra.mrb[0].mxu0 %v353
  %v444 = vpop.f32.mrb[0].mxu0
  %v445 = vadd.f32 %v376, %v444
  %v446 = vpop.f32.mrb[0].mxu0
  %447 = vmatprep.mubr.f32.mxu0 0.0
  %448 = vmatmul.mubr.f32.gmra.mrb[0].mxu0 %v354
  %v449 = vpop.f32.mrb[0].mxu0
  %v450 = vadd.f32 %v376, %v449
  %v451 = vpop.f32.mrb[0].mxu0
  %452 = vdwg.mxu0
  %453 = vst [vmem:[%s8] sm:$0xff] %v445
  %454 = vst [vmem:[%s8 + $0x8] sm:$0xff] %v450
  // Predicated region
  $region34: #{bert_oracle_forward.1} parent=0 // pred_check
    _
  $region35: #{bert_oracle_forward.1} parent=0 // pred_check_branch
    %456 = sbr.rel (0) target = $region37
  $region36: #{bert_oracle_forward.1} parent=0 // pred_region
    _
  $region37: #{bert_oracle_forward.1} parent=0 // pred_fallthru
    _
  // Predicated region
  $region38: #{bert_oracle_forward.1} parent=0 // pred_check
    _
  $region39: #{bert_oracle_forward.1} parent=0 // pred_check_branch
    %458 = sbr.rel (0) target = $region41
  $region40: #{bert_oracle_forward.1} parent=0 // pred_region
    _
  $region41: #{bert_oracle_forward.1} parent=0 // pred_fallthru
    _

</llo_original>
